<compile_context>
chip_gen: v7x
topology: tpu7x:2x2x1
jax: 0.10.0
libtpu: 0.0.40
codegen_flags: <defaults>
</compile_context>

<pallas_src>
import jax
import jax.numpy as jnp
from jax.experimental import pallas as pl
from jax.experimental.pallas import tpu as pltpu


def _round_up(n, m):
    return ((n + m - 1) // m) * m


def _rnn_seq_kernel(x_ref, h0_ref, w1x_ref, w1h_ref, b1_ref, w2_ref, b2_ref,
                    out_ref, hfin_ref, h_carry):
    """One fused RNN step per grid iteration; hidden state carried in VMEM scratch.

    x_ref   : (1, OD, B)    block for timestep t (B = padded batch, lane axis)
    h0_ref  : (NH, B)       initial hidden state (resident, read at t == 0)
    w1x_ref : (NH, OD)      i2h weight slice acting on x
    w1h_ref : (NH, NH)      i2h weight slice acting on h
    b1_ref  : (NH, 1)
    w2_ref  : (OUT, NH)     h2o weight
    b2_ref  : (OUT, 1)
    out_ref : (1, OUT, B)   per-timestep output block
    hfin_ref: (NH, B)       final hidden state (written on last step)
    h_carry : VMEM scratch (NH, B) — the recurrent carry
    """
    t = pl.program_id(0)
    nt = pl.num_programs(0)

    @pl.when(t == 0)
    def _init():
        h_carry[...] = h0_ref[...]

    x_t = x_ref[0]                       # (OD, B) — already transposed in wrapper
    h = h_carry[...]                     # (NH, B)

    pre = (jnp.dot(w1x_ref[...], x_t, preferred_element_type=jnp.float32)
           + jnp.dot(w1h_ref[...], h, preferred_element_type=jnp.float32)
           + b1_ref[...])
    h_new = jnp.tanh(pre)                # (NH, B)

    out = (jnp.dot(w2_ref[...], h_new, preferred_element_type=jnp.float32)
           + b2_ref[...])                # (OUT, B)

    out_ref[0] = out.astype(out_ref.dtype)
    h_carry[...] = h_new

    @pl.when(t == nt - 1)
    def _finalize():
        hfin_ref[...] = h_new.astype(hfin_ref.dtype)


def recognition_rnn_sequence(xs, h0, w1, b1, w2, b2):
    """Run the Recognition_RNN cell over T timesteps inside a single pallas_call.

    xs: (T, nbatch, obs_dims)   h0: (nhidden, nbatch)
    w1: (nhidden, obs_dims + nhidden), b1: (nhidden, 1)
    w2: (out_dims, nhidden),           b2: (out_dims, 1)
    Returns (outs, h_final) with outs: (T, out_dims, nbatch), h_final: (nhidden, nbatch),
    identical to applying Recognition_RNN.forward sequentially over the T timesteps.
    """
    T, nbatch, obs_dims = xs.shape
    nhidden = h0.shape[0]
    out_dims = w2.shape[0]

    # --- XLA-side layout plumbing (kept out of the kernel) ------------------
    # Lane axis (batch) padded to a multiple of 128 for unmasked, lane-dense stores;
    # sublane / feature axes padded to multiples of 8 (zero padding is exact).
    B = max(128, _round_up(nbatch, 128))
    OD = _round_up(obs_dims, 8)
    NH = _round_up(nhidden, 8)
    OUT = _round_up(out_dims, 8)

    pad_b = B - nbatch
    pad_od = OD - obs_dims
    pad_nh = NH - nhidden
    pad_out = OUT - out_dims

    xs_t = jnp.transpose(xs, (0, 2, 1)).astype(jnp.float32)        # (T, obs_dims, nbatch)
    xs_t = jnp.pad(xs_t, ((0, 0), (0, pad_od), (0, pad_b)))        # (T, OD, B)
    h0_p = jnp.pad(h0.astype(jnp.float32), ((0, pad_nh), (0, pad_b)))   # (NH, B)

    w1x = jnp.pad(w1[:, :obs_dims].astype(jnp.float32),
                  ((0, pad_nh), (0, pad_od)))                      # (NH, OD)
    w1h = jnp.pad(w1[:, obs_dims:obs_dims + nhidden].astype(jnp.float32),
                  ((0, pad_nh), (0, pad_nh)))                      # (NH, NH)
    b1c = jnp.pad(b1.reshape(nhidden, 1).astype(jnp.float32),
                  ((0, pad_nh), (0, 0)))                           # (NH, 1)
    w2c = jnp.pad(w2.astype(jnp.float32),
                  ((0, pad_out), (0, pad_nh)))                     # (OUT, NH)
    b2c = jnp.pad(b2.reshape(out_dims, 1).astype(jnp.float32),
                  ((0, pad_out), (0, 0)))                          # (OUT, 1)

    const2 = lambda t: (0, 0)   # resident blocks (weights, biases, h0, h_final)

    outs, h_fin = pl.pallas_call(
        _rnn_seq_kernel,
        grid=(T,),
        in_specs=[
            pl.BlockSpec((1, OD, B), lambda t: (t, 0, 0)),   # x_t streams per step
            pl.BlockSpec((NH, B), const2),                   # h0  (resident)
            pl.BlockSpec((NH, OD), const2),                  # w1x (resident)
            pl.BlockSpec((NH, NH), const2),                  # w1h (resident)
            pl.BlockSpec((NH, 1), const2),                   # b1  (resident)
            pl.BlockSpec((OUT, NH), const2),                 # w2  (resident)
            pl.BlockSpec((OUT, 1), const2),                  # b2  (resident)
        ],
        out_specs=(
            pl.BlockSpec((1, OUT, B), lambda t: (t, 0, 0)),  # out_t streams per step
            pl.BlockSpec((NH, B), const2),                   # h_final (resident)
        ),
        out_shape=(
            jax.ShapeDtypeStruct((T, OUT, B), jnp.float32),
            jax.ShapeDtypeStruct((NH, B), jnp.float32),
        ),
        scratch_shapes=[pltpu.VMEM((NH, B), jnp.float32)],   # recurrent carry
        compiler_params=pltpu.CompilerParams(
            dimension_semantics=("arbitrary",)),             # time is a recurrence
    )(xs_t, h0_p, w1x, w1h, b1c, w2c, b2c)

    # Strip the padding added in the wrapper.
    return outs[:, :out_dims, :nbatch], h_fin[:nhidden, :nbatch]


def recognition_rnn_forward(x, h, w1, b1, w2, b2):
    """Exact single-step Recognition_RNN.forward: returns (out, h_new)."""
    outs, h_new = recognition_rnn_sequence(x[None], h, w1, b1, w2, b2)
    return outs[0], h_new


if __name__ == "__main__":
    latent_dims, obs_dims, nhidden, nbatch, T = 8, 16, 32, 4, 8

    key = jax.random.PRNGKey(0)
    k = jax.random.split(key, 5)

    # Deterministic parameter init (uniform +-1/sqrt(fan_in), like torch Linear default)
    in1 = obs_dims + nhidden
    s1 = 1.0 / jnp.sqrt(jnp.float32(in1))
    s2 = 1.0 / jnp.sqrt(jnp.float32(nhidden))
    w1 = jax.random.uniform(k[0], (nhidden, in1), jnp.float32, -1.0, 1.0) * s1
    b1 = jax.random.uniform(k[1], (nhidden, 1), jnp.float32, -1.0, 1.0) * s1
    w2 = jax.random.uniform(k[2], (2 * latent_dims, nhidden), jnp.float32, -1.0, 1.0) * s2
    b2 = jax.random.uniform(k[3], (2 * latent_dims, 1), jnp.float32, -1.0, 1.0) * s2

    # Inputs: a length-T sequence of x (nbatch, obs_dims); h from initHidden() -> zeros.
    xs = jax.random.normal(k[4], (T, nbatch, obs_dims), jnp.float32)
    h0 = jnp.zeros((nhidden, nbatch), jnp.float32)

    outs, h_fin = recognition_rnn_sequence(xs, h0, w1, b1, w2, b2)
    out1, h1 = recognition_rnn_forward(xs[0], h0, w1, b1, w2, b2)
    jax.block_until_ready((outs, h_fin, out1, h1))

    # Pure-JAX reference of the torch forward semantics, unrolled over time.
    def ref_step(x, h):
        combined = jnp.concatenate([x.T, h], axis=0)         # (obs+nhidden, nbatch)
        h_new = jnp.tanh(w1 @ combined + b1)                 # (nhidden, nbatch)
        return w2 @ h_new + b2, h_new                        # (2*latent, nbatch)

    h_ref = h0
    outs_ref = []
    for t in range(T):
        o_ref, h_ref = ref_step(xs[t], h_ref)
        outs_ref.append(o_ref)
    outs_ref = jnp.stack(outs_ref, axis=0)

    assert outs.shape == (T, 2 * latent_dims, nbatch)
    assert h_fin.shape == (nhidden, nbatch)
    assert jnp.allclose(outs, outs_ref, atol=1e-4, rtol=1e-4)
    assert jnp.allclose(h_fin, h_ref, atol=1e-4, rtol=1e-4)
    assert jnp.allclose(out1, outs_ref[0], atol=1e-4, rtol=1e-4)
    assert jnp.allclose(h1, jnp.tanh(w1 @ jnp.concatenate([xs[0].T, h0], 0) + b1),
                        atol=1e-4, rtol=1e-4)

    print("KERNEL_OK")
</pallas_src>

<mosaic_0001>
module attributes {stable_mosaic.version = 11 : i64} {
  func.func @_rnn_seq_kernel(%arg0: i32, %arg1: memref<1x16x128xf32, #tpu.memory_space<vmem>>, %arg2: memref<32x128xf32, #tpu.memory_space<vmem>>, %arg3: memref<32x16xf32, #tpu.memory_space<vmem>>, %arg4: memref<32x32xf32, #tpu.memory_space<vmem>>, %arg5: memref<32x1xf32, #tpu.memory_space<vmem>>, %arg6: memref<16x32xf32, #tpu.memory_space<vmem>>, %arg7: memref<16x1xf32, #tpu.memory_space<vmem>>, %arg8: memref<1x16x128xf32, #tpu.memory_space<vmem>>, %arg9: memref<32x128xf32, #tpu.memory_space<vmem>>, %arg10: memref<32x128xf32, #tpu.memory_space<vmem>>) attributes {dimension_semantics = [#tpu.dimension_semantics<arbitrary>], iteration_bounds = array<i64: 8>, scalar_prefetch = 0 : i64, scratch_operands = 1 : i64, tpu.core_type = #tpu.core_type<tc>, window_params = [{transform_indices = @transform_0, window_bounds = array<i64: 1, 16, 128>}, {pipeline_mode = #tpu.pipeline_mode<synchronous>, transform_indices = @transform_1, window_bounds = array<i64: 32, 128>}, {pipeline_mode = #tpu.pipeline_mode<synchronous>, transform_indices = @transform_2, window_bounds = array<i64: 32, 16>}, {pipeline_mode = #tpu.pipeline_mode<synchronous>, transform_indices = @transform_3, window_bounds = array<i64: 32, 32>}, {pipeline_mode = #tpu.pipeline_mode<synchronous>, transform_indices = @transform_4, window_bounds = array<i64: 32, 1>}, {pipeline_mode = #tpu.pipeline_mode<synchronous>, transform_indices = @transform_5, window_bounds = array<i64: 16, 32>}, {pipeline_mode = #tpu.pipeline_mode<synchronous>, transform_indices = @transform_6, window_bounds = array<i64: 16, 1>}, {transform_indices = @transform_7, window_bounds = array<i64: 1, 16, 128>}, {pipeline_mode = #tpu.pipeline_mode<synchronous>, transform_indices = @transform_8, window_bounds = array<i64: 32, 128>}]} {
    %c0_i32 = arith.constant 0 : i32
    %0 = arith.cmpi eq, %arg0, %c0_i32 : i32
    %1 = arith.extui %0 : i1 to i32
    %c0_i32_0 = arith.constant 0 : i32
    %2 = arith.cmpi ne, %1, %c0_i32_0 : i32
    scf.if %2 {
      %c0_23 = arith.constant 0 : index
      %c0_24 = arith.constant 0 : index
      %27 = vector.load %arg2[%c0_23, %c0_24] : memref<32x128xf32, #tpu.memory_space<vmem>>, vector<32x128xf32>
      %c0_25 = arith.constant 0 : index
      %c0_26 = arith.constant 0 : index
      %28 = vector.load %arg10[%c0_25, %c0_26] : memref<32x128xf32, #tpu.memory_space<vmem>>, vector<32x128xf32>
      tpu.vector_store %arg10[%c0_25, %c0_26], %27 {strides = array<i32>} : memref<32x128xf32, #tpu.memory_space<vmem>>, vector<32x128xf32>,
    } else {
    }
    %c0 = arith.constant 0 : index
    %c0_1 = arith.constant 0 : index
    %c0_2 = arith.constant 0 : index
    %3 = vector.load %arg1[%c0, %c0_1, %c0_2] : memref<1x16x128xf32, #tpu.memory_space<vmem>>, vector<1x16x128xf32>
    %4 = vector.shape_cast %3 : vector<1x16x128xf32> to vector<16x128xf32>
    %c0_3 = arith.constant 0 : index
    %c0_4 = arith.constant 0 : index
    %5 = vector.load %arg10[%c0_3, %c0_4] : memref<32x128xf32, #tpu.memory_space<vmem>>, vector<32x128xf32>
    %c0_5 = arith.constant 0 : index
    %c0_6 = arith.constant 0 : index
    %6 = vector.load %arg3[%c0_5, %c0_6] : memref<32x16xf32, #tpu.memory_space<vmem>>, vector<32x16xf32>
    %cst = arith.constant dense<0.000000e+00> : vector<32x128xf32>
    %7 = tpu.matmul %6, %4, %cst {dimension_numbers = #tpu.dot_dimension_numbers<[1], [0], [0], [1], [0, 0, 1, 1], [], []>} : vector<32x16xf32>, vector<16x128xf32>, vector<32x128xf32> -> vector<32x128xf32>
    %c0_7 = arith.constant 0 : index
    %c0_8 = arith.constant 0 : index
    %8 = vector.load %arg4[%c0_7, %c0_8] : memref<32x32xf32, #tpu.memory_space<vmem>>, vector<32x32xf32>
    %cst_9 = arith.constant dense<0.000000e+00> : vector<32x128xf32>
    %9 = tpu.matmul %8, %5, %cst_9 {dimension_numbers = #tpu.dot_dimension_numbers<[1], [0], [0], [1], [0, 0, 1, 1], [], []>} : vector<32x32xf32>, vector<32x128xf32>, vector<32x128xf32> -> vector<32x128xf32>
    %10 = arith.addf %7, %9 : vector<32x128xf32>
    %c0_10 = arith.constant 0 : index
    %c0_11 = arith.constant 0 : index
    %11 = vector.load %arg5[%c0_10, %c0_11] : memref<32x1xf32, #tpu.memory_space<vmem>>, vector<32x1xf32>
    %12 = vector.broadcast %11 : vector<32x1xf32> to vector<32x128xf32>
    %13 = arith.addf %10, %12 : vector<32x128xf32>
    %14 = math.tanh %13 : vector<32x128xf32>
    %c0_12 = arith.constant 0 : index
    %c0_13 = arith.constant 0 : index
    %15 = vector.load %arg6[%c0_12, %c0_13] : memref<16x32xf32, #tpu.memory_space<vmem>>, vector<16x32xf32>
    %cst_14 = arith.constant dense<0.000000e+00> : vector<16x128xf32>
    %16 = tpu.matmul %15, %14, %cst_14 {dimension_numbers = #tpu.dot_dimension_numbers<[1], [0], [0], [1], [0, 0, 1, 1], [], []>} : vector<16x32xf32>, vector<32x128xf32>, vector<16x128xf32> -> vector<16x128xf32>
    %c0_15 = arith.constant 0 : index
    %c0_16 = arith.constant 0 : index
    %17 = vector.load %arg7[%c0_15, %c0_16] : memref<16x1xf32, #tpu.memory_space<vmem>>, vector<16x1xf32>
    %18 = vector.broadcast %17 : vector<16x1xf32> to vector<16x128xf32>
    %19 = arith.addf %16, %18 : vector<16x128xf32>
    %c0_17 = arith.constant 0 : index
    %c0_18 = arith.constant 0 : index
    %c0_19 = arith.constant 0 : index
    %20 = vector.load %arg8[%c0_17, %c0_18, %c0_19] : memref<1x16x128xf32, #tpu.memory_space<vmem>>, vector<1x16x128xf32>
    %21 = vector.shape_cast %20 : vector<1x16x128xf32> to vector<16x128xf32>
    %22 = vector.shape_cast %19 : vector<16x128xf32> to vector<1x16x128xf32>
    tpu.vector_store %arg8[%c0_17, %c0_18, %c0_19], %22 {strides = array<i32>} : memref<1x16x128xf32, #tpu.memory_space<vmem>>, vector<1x16x128xf32>,
    %c0_20 = arith.constant 0 : index
    %c0_21 = arith.constant 0 : index
    %23 = vector.load %arg10[%c0_20, %c0_21] : memref<32x128xf32, #tpu.memory_space<vmem>>, vector<32x128xf32>
    tpu.vector_store %arg10[%c0_20, %c0_21], %14 {strides = array<i32>} : memref<32x128xf32, #tpu.memory_space<vmem>>, vector<32x128xf32>,
    %c7_i32 = arith.constant 7 : i32
    %24 = arith.cmpi eq, %arg0, %c7_i32 : i32
    %25 = arith.extui %24 : i1 to i32
    %c0_i32_22 = arith.constant 0 : i32
    %26 = arith.cmpi ne, %25, %c0_i32_22 : i32
    scf.if %26 {
      %c0_23 = arith.constant 0 : index
      %c0_24 = arith.constant 0 : index
      %27 = vector.load %arg9[%c0_23, %c0_24] : memref<32x128xf32, #tpu.memory_space<vmem>>, vector<32x128xf32>
      tpu.vector_store %arg9[%c0_23, %c0_24], %14 {strides = array<i32>} : memref<32x128xf32, #tpu.memory_space<vmem>>, vector<32x128xf32>,
    } else {
    }
    return
  }
  func.func @transform_0(%arg0: i32) -> (i32, i32, i32) {
    %c0_i32 = arith.constant 0 : i32
    %c0_i32_0 = arith.constant 0 : i32
    %c0_i32_1 = arith.constant 0 : i32
    return %arg0, %c0_i32, %c0_i32_0 : i32, i32, i32
  }
  func.func @transform_1(%arg0: i32) -> (i32, i32) {
    %c0_i32 = arith.constant 0 : i32
    %c0_i32_0 = arith.constant 0 : i32
    %c0_i32_1 = arith.constant 0 : i32
    return %c0_i32, %c0_i32_0 : i32, i32
  }
  func.func @transform_2(%arg0: i32) -> (i32, i32) {
    %c0_i32 = arith.constant 0 : i32
    %c0_i32_0 = arith.constant 0 : i32
    %c0_i32_1 = arith.constant 0 : i32
    return %c0_i32, %c0_i32_0 : i32, i32
  }
  func.func @transform_3(%arg0: i32) -> (i32, i32) {
    %c0_i32 = arith.constant 0 : i32
    %c0_i32_0 = arith.constant 0 : i32
    %c0_i32_1 = arith.constant 0 : i32
    return %c0_i32, %c0_i32_0 : i32, i32
  }
  func.func @transform_4(%arg0: i32) -> (i32, i32) {
    %c0_i32 = arith.constant 0 : i32
    %c0_i32_0 = arith.constant 0 : i32
    %c0_i32_1 = arith.constant 0 : i32
    return %c0_i32, %c0_i32_0 : i32, i32
  }
  func.func @transform_5(%arg0: i32) -> (i32, i32) {
    %c0_i32 = arith.constant 0 : i32
    %c0_i32_0 = arith.constant 0 : i32
    %c0_i32_1 = arith.constant 0 : i32
    return %c0_i32, %c0_i32_0 : i32, i32
  }
  func.func @transform_6(%arg0: i32) -> (i32, i32) {
    %c0_i32 = arith.constant 0 : i32
    %c0_i32_0 = arith.constant 0 : i32
    %c0_i32_1 = arith.constant 0 : i32
    return %c0_i32, %c0_i32_0 : i32, i32
  }
  func.func @transform_7(%arg0: i32) -> (i32, i32, i32) {
    %c0_i32 = arith.constant 0 : i32
    %c0_i32_0 = arith.constant 0 : i32
    %c0_i32_1 = arith.constant 0 : i32
    return %arg0, %c0_i32, %c0_i32_0 : i32, i32, i32
  }
  func.func @transform_8(%arg0: i32) -> (i32, i32) {
    %c0_i32 = arith.constant 0 : i32
    %c0_i32_0 = arith.constant 0 : i32
    %c0_i32_1 = arith.constant 0 : i32
    return %c0_i32, %c0_i32_0 : i32, i32
  }
}

</mosaic_0001>

<llo_original>
// kernel: tpu_custom_call.1
$region0: #{tpu_custom_call.1}
  #allocation0 [shape = 'u32[]', space=smem, size = 0x4, offset = 0x4, fixed_abs, tag = 'smem constant byte address 0x4 - core index']
  #allocation1 [shape = 'u32[144,128]{1,0:T(1,128)}', space=vmem, size = 0x12000, scoped, tag = 'internal scratch']
  #allocation2 [shape = 'f32[32,128]{1,0:T(8,128)}', space=vmem, size = 0x4000, scoped, tag = 'scratch operand']
  %s0 = inlined_call_operand.hbm [shape: f32[8,16,128], index: 0, kind: input, shape index: {}]
  %s1 = inlined_call_operand.vmem [shape: f32[32,128], index: 1, kind: input, shape index: {}]
  %s2 = inlined_call_operand.vmem [shape: f32[32,16], index: 2, kind: input, shape index: {}]
  %s3 = inlined_call_operand.vmem [shape: f32[32,32], index: 3, kind: input, shape index: {}]
  %s4 = inlined_call_operand.vmem [shape: f32[32,1], index: 4, kind: input, shape index: {}]
  %s5 = inlined_call_operand.vmem [shape: f32[16,32], index: 5, kind: input, shape index: {}]
  %s6 = inlined_call_operand.vmem [shape: f32[16,1], index: 6, kind: input, shape index: {}]
  %s7 = inlined_call_operand.hbm [shape: f32[8,16,128], index: 7, kind: output, shape index: {0}]
  %s8 = inlined_call_operand.hbm [shape: f32[32,128], index: 8, kind: output, shape index: {1}]
  %9 = xla_tuple %s7, %s8
  %s10 = sld [smem:[#allocation0]]
  $region81: #{tpu_custom_call.1} parent=0
    _
  %s12 = ssub.s32 1, %s10
  %s13 = scalar_select 0, %s12, %s10
  $region1: #{tpu_custom_call.1} parent=0
    #allocation3 [shape = 'u8[16384]{0}', space=vmem, size = 0x4000, scoped, tag = 'input window, operand 0']
    #allocation4 [shape = 's32[2]{0}', space=sflag, size = 0x8, scoped, tag = 'scoped memory for tpu_custom_call.1']
    #allocation5 [shape = 's32[2]{0}', space=sflag, size = 0x8, scoped, tag = 'scoped memory for tpu_custom_call.1']
    #allocation6 [shape = 'u8[16384]{0}', space=vmem, size = 0x4000, scoped, tag = 'output window, operand 0']
    #allocation7 [shape = 'u8[16384]{0}', space=vmem, size = 0x4000, scoped, tag = 'output window, operand 1, single buffered']
    #allocation8 [shape = 's32[1]{0}', space=sflag, size = 0x4, scoped, tag = 'scoped memory for tpu_custom_call.1']
    %14 = vsyncpa [#allocation4], 0
    %s15 = scalar_lea.sflag [#allocation4], 1
    %16 = vsyncpa %s15, 0
    %17 = vsyncpa [#allocation5], 0
    %s18 = scalar_lea.sflag [#allocation5], 1
    %19 = vsyncpa %s18, 0
    %20 = vsyncpa [#allocation8], 0
    loop: start=0, step=1, limit=10
    $region2: #{tpu_custom_call.1} parent=1 // loop_pre_header
      _
    $region3: #{tpu_custom_call.1} parent=1 // loop_header
      %s22 = sphi 0, %s26
      %p23 = scmp.ge.s32.totalorder %s22, 10
      %s32 = sphi 0, %s34
      %s35 = sphi 0, %s32
      %s36 = sphi 0, %s35
      %s52 = sphi 0, %s36
      %s56 = sphi 0, %s56
      %s58 = sphi 0, %s56
      %s59 = sphi 0, %s58
      %s73 = sphi 0, %s59
      %s77 = sphi 0, %s77
      %s79 = sphi 0, %s77
      %s80 = sphi 0, %s79
      %s94 = sphi 0, %s80
      %s98 = sphi 0, %s98
      %s100 = sphi 0, %s98
      %s101 = sphi 0, %s100
      %s115 = sphi 0, %s101
      %s119 = sphi 0, %s119
      %s121 = sphi 0, %s119
      %s122 = sphi 0, %s121
      %s136 = sphi 0, %s122
      %s140 = sphi 0, %s140
      %s142 = sphi 0, %s140
      %s143 = sphi 0, %s142
      %s157 = sphi 0, %s143
      %s161 = sphi 0, %s161
      %s163 = sphi 0, %s161
      %s164 = sphi 0, %s163
      %s178 = sphi 0, %s164
      %s184 = sphi 0, %s186
      %s187 = sphi 0, %s184
      %s188 = sphi 0, %s187
      %s204 = sphi 0, %s188
      %s208 = sphi 0, %s208
      %s210 = sphi 0, %s208
      %s211 = sphi 0, %s210
      %s225 = sphi 0, %s211
    $region4: #{tpu_custom_call.1} parent=1 // loop_header_branch
      %25 = sbr.rel (%p23) target = $region8
    $region5: #{tpu_custom_call.1} parent=1 // loop_body
      %s27 = ssub.s32 %s22, 1
      %s28 = ssub.s32 %s22, 2
      %s29 = sadd.s32 %s22, 1
      %s30 = ssub.s32 %s22, %s29
      %p31 = scmp.eq.s32.totalorder %s30, 0
      %s33 = sadd.s32 %s32, 1
      %s34 = scalar_select %p31, %s32, %s33
      %p37 = pneg %p31
      %p38 = scmp.eq.s32.totalorder %s22, 7
      %p39 = por %p37, %p38
      %p40 = scmp.ne.s32.totalorder %s32, %s35
      %p41 = scmp.eq.s32.totalorder %s22, 0
      %p42 = por %p40, %p41
      %p43 = scmp.ne.s32.totalorder %s32, %s35
      %p44 = scmp.eq.s32.totalorder %s27, 7
      %p45 = por %p43, %p44
      %p46 = scmp.ne.s32.totalorder %s35, %s36
      %p47 = scmp.eq.s32.totalorder %s27, 0
      %p48 = por %p46, %p47
      %p49 = scmp.ne.s32.totalorder %s35, %s36
      %p50 = scmp.eq.s32.totalorder %s28, 7
      %p51 = por %p49, %p50
      %p53 = scmp.ne.s32.totalorder %s36, %s52
      %p54 = scmp.eq.s32.totalorder %s28, 0
      %p55 = por %p53, %p54
      %s57 = sadd.s32 %s56, 1
      %p60 = scmp.eq.s32.totalorder %s22, 7
      %p61 = scmp.ne.s32.totalorder %s56, %s58
      %p62 = scmp.eq.s32.totalorder %s22, 0
      %p63 = por %p61, %p62
      %p64 = scmp.ne.s32.totalorder %s56, %s58
      %p65 = scmp.eq.s32.totalorder %s27, 7
      %p66 = por %p64, %p65
      %p67 = scmp.ne.s32.totalorder %s58, %s59
      %p68 = scmp.eq.s32.totalorder %s27, 0
      %p69 = por %p67, %p68
      %p70 = scmp.ne.s32.totalorder %s58, %s59
      %p71 = scmp.eq.s32.totalorder %s28, 7
      %p72 = por %p70, %p71
      %p74 = scmp.ne.s32.totalorder %s59, %s73
      %p75 = scmp.eq.s32.totalorder %s28, 0
      %p76 = por %p74, %p75
      %s78 = sadd.s32 %s77, 1
      %p81 = scmp.eq.s32.totalorder %s22, 7
      %p82 = scmp.ne.s32.totalorder %s77, %s79
      %p83 = scmp.eq.s32.totalorder %s22, 0
      %p84 = por %p82, %p83
      %p85 = scmp.ne.s32.totalorder %s77, %s79
      %p86 = scmp.eq.s32.totalorder %s27, 7
      %p87 = por %p85, %p86
      %p88 = scmp.ne.s32.totalorder %s79, %s80
      %p89 = scmp.eq.s32.totalorder %s27, 0
      %p90 = por %p88, %p89
      %p91 = scmp.ne.s32.totalorder %s79, %s80
      %p92 = scmp.eq.s32.totalorder %s28, 7
      %p93 = por %p91, %p92
      %p95 = scmp.ne.s32.totalorder %s80, %s94
      %p96 = scmp.eq.s32.totalorder %s28, 0
      %p97 = por %p95, %p96
      %s99 = sadd.s32 %s98, 1
      %p102 = scmp.eq.s32.totalorder %s22, 7
      %p103 = scmp.ne.s32.totalorder %s98, %s100
      %p104 = scmp.eq.s32.totalorder %s22, 0
      %p105 = por %p103, %p104
      %p106 = scmp.ne.s32.totalorder %s98, %s100
      %p107 = scmp.eq.s32.totalorder %s27, 7
      %p108 = por %p106, %p107
      %p109 = scmp.ne.s32.totalorder %s100, %s101
      %p110 = scmp.eq.s32.totalorder %s27, 0
      %p111 = por %p109, %p110
      %p112 = scmp.ne.s32.totalorder %s100, %s101
      %p113 = scmp.eq.s32.totalorder %s28, 7
      %p114 = por %p112, %p113
      %p116 = scmp.ne.s32.totalorder %s101, %s115
      %p117 = scmp.eq.s32.totalorder %s28, 0
      %p118 = por %p116, %p117
      %s120 = sadd.s32 %s119, 1
      %p123 = scmp.eq.s32.totalorder %s22, 7
      %p124 = scmp.ne.s32.totalorder %s119, %s121
      %p125 = scmp.eq.s32.totalorder %s22, 0
      %p126 = por %p124, %p125
      %p127 = scmp.ne.s32.totalorder %s119, %s121
      %p128 = scmp.eq.s32.totalorder %s27, 7
      %p129 = por %p127, %p128
      %p130 = scmp.ne.s32.totalorder %s121, %s122
      %p131 = scmp.eq.s32.totalorder %s27, 0
      %p132 = por %p130, %p131
      %p133 = scmp.ne.s32.totalorder %s121, %s122
      %p134 = scmp.eq.s32.totalorder %s28, 7
      %p135 = por %p133, %p134
      %p137 = scmp.ne.s32.totalorder %s122, %s136
      %p138 = scmp.eq.s32.totalorder %s28, 0
      %p139 = por %p137, %p138
      %s141 = sadd.s32 %s140, 1
      %p144 = scmp.eq.s32.totalorder %s22, 7
      %p145 = scmp.ne.s32.totalorder %s140, %s142
      %p146 = scmp.eq.s32.totalorder %s22, 0
      %p147 = por %p145, %p146
      %p148 = scmp.ne.s32.totalorder %s140, %s142
      %p149 = scmp.eq.s32.totalorder %s27, 7
      %p150 = por %p148, %p149
      %p151 = scmp.ne.s32.totalorder %s142, %s143
      %p152 = scmp.eq.s32.totalorder %s27, 0
      %p153 = por %p151, %p152
      %p154 = scmp.ne.s32.totalorder %s142, %s143
      %p155 = scmp.eq.s32.totalorder %s28, 7
      %p156 = por %p154, %p155
      %p158 = scmp.ne.s32.totalorder %s143, %s157
      %p159 = scmp.eq.s32.totalorder %s28, 0
      %p160 = por %p158, %p159
      %s162 = sadd.s32 %s161, 1
      %p165 = scmp.eq.s32.totalorder %s22, 7
      %p166 = scmp.ne.s32.totalorder %s161, %s163
      %p167 = scmp.eq.s32.totalorder %s22, 0
      %p168 = por %p166, %p167
      %p169 = scmp.ne.s32.totalorder %s161, %s163
      %p170 = scmp.eq.s32.totalorder %s27, 7
      %p171 = por %p169, %p170
      %p172 = scmp.ne.s32.totalorder %s163, %s164
      %p173 = scmp.eq.s32.totalorder %s27, 0
      %p174 = por %p172, %p173
      %p175 = scmp.ne.s32.totalorder %s163, %s164
      %p176 = scmp.eq.s32.totalorder %s28, 7
      %p177 = por %p175, %p176
      %p179 = scmp.ne.s32.totalorder %s164, %s178
      %p180 = scmp.eq.s32.totalorder %s28, 0
      %p181 = por %p179, %p180
      %s182 = ssub.s32 %s22, %s29
      %p183 = scmp.eq.s32.totalorder %s182, 0
      %s185 = sadd.s32 %s184, 1
      %s186 = scalar_select %p183, %s184, %s185
      %p189 = pneg %p183
      %p190 = scmp.eq.s32.totalorder %s22, 7
      %p191 = por %p189, %p190
      %p192 = scmp.ne.s32.totalorder %s184, %s187
      %p193 = scmp.eq.s32.totalorder %s22, 0
      %p194 = por %p192, %p193
      %p195 = scmp.ne.s32.totalorder %s184, %s187
      %p196 = scmp.eq.s32.totalorder %s27, 7
      %p197 = por %p195, %p196
      %p198 = scmp.ne.s32.totalorder %s187, %s188
      %p199 = scmp.eq.s32.totalorder %s27, 0
      %p200 = por %p198, %p199
      %p201 = scmp.ne.s32.totalorder %s187, %s188
      %p202 = scmp.eq.s32.totalorder %s28, 7
      %p203 = por %p201, %p202
      %p205 = scmp.ne.s32.totalorder %s188, %s204
      %p206 = scmp.eq.s32.totalorder %s28, 0
      %p207 = por %p205, %p206
      %s209 = sadd.s32 %s208, 1
      %p212 = scmp.eq.s32.totalorder %s22, 7
      %p213 = scmp.ne.s32.totalorder %s208, %s210
      %p214 = scmp.eq.s32.totalorder %s22, 0
      %p215 = por %p213, %p214
      %p216 = scmp.ne.s32.totalorder %s208, %s210
      %p217 = scmp.eq.s32.totalorder %s27, 7
      %p218 = por %p216, %p217
      %p219 = scmp.ne.s32.totalorder %s210, %s211
      %p220 = scmp.eq.s32.totalorder %s27, 0
      %p221 = por %p219, %p220
      %p222 = scmp.ne.s32.totalorder %s210, %s211
      %p223 = scmp.eq.s32.totalorder %s28, 7
      %p224 = por %p222, %p223
      %p226 = scmp.ne.s32.totalorder %s211, %s225
      %p227 = scmp.eq.s32.totalorder %s28, 0
      %p228 = por %p226, %p227
      %p229 = scmp.le.s32.totalorder 1, %s22
      %p230 = scmp.lt.s32.totalorder %s22, 9
      %p231 = pnand %p229, %p230
      %p232 = pneg %p231
      // Predicated region
      $region9: #{tpu_custom_call.1} parent=5 // pred_check
        _
      $region10: #{tpu_custom_call.1} parent=5 // pred_check_branch
        %234 = sbr.rel (%p231) target = $region12
      $region11: #{tpu_custom_call.1} parent=5 // pred_region
        %s235 = ssub.s32 %s22, 1
        // Predicated region
        $region13: #{tpu_custom_call.1} parent=11 // pred_check
          %p236 = pneg %p69
        $region14: #{tpu_custom_call.1} parent=11 // pred_check_branch
          %238 = sbr.rel (%p236) target = $region16
        $region15: #{tpu_custom_call.1} parent=11 // pred_region
          _
        $region16: #{tpu_custom_call.1} parent=11 // pred_fallthru
          _
        // Predicated region
        $region17: #{tpu_custom_call.1} parent=11 // pred_check
          %p239 = pneg %p90
        $region18: #{tpu_custom_call.1} parent=11 // pred_check_branch
          %241 = sbr.rel (%p239) target = $region20
        $region19: #{tpu_custom_call.1} parent=11 // pred_region
          _
        $region20: #{tpu_custom_call.1} parent=11 // pred_fallthru
          _
        // Predicated region
        $region21: #{tpu_custom_call.1} parent=11 // pred_check
          %p242 = pneg %p111
        $region22: #{tpu_custom_call.1} parent=11 // pred_check_branch
          %244 = sbr.rel (%p242) target = $region24
        $region23: #{tpu_custom_call.1} parent=11 // pred_region
          _
        $region24: #{tpu_custom_call.1} parent=11 // pred_fallthru
          _
        // Predicated region
        $region25: #{tpu_custom_call.1} parent=11 // pred_check
          %p245 = pneg %p132
        $region26: #{tpu_custom_call.1} parent=11 // pred_check_branch
          %247 = sbr.rel (%p245) target = $region28
        $region27: #{tpu_custom_call.1} parent=11 // pred_region
          _
        $region28: #{tpu_custom_call.1} parent=11 // pred_fallthru
          _
        // Predicated region
        $region29: #{tpu_custom_call.1} parent=11 // pred_check
          %p248 = pneg %p153
        $region30: #{tpu_custom_call.1} parent=11 // pred_check_branch
          %250 = sbr.rel (%p248) target = $region32
        $region31: #{tpu_custom_call.1} parent=11 // pred_region
          _
        $region32: #{tpu_custom_call.1} parent=11 // pred_fallthru
          _
        // Predicated region
        $region33: #{tpu_custom_call.1} parent=11 // pred_check
          %p251 = pneg %p174
        $region34: #{tpu_custom_call.1} parent=11 // pred_check_branch
          %253 = sbr.rel (%p251) target = $region36
        $region35: #{tpu_custom_call.1} parent=11 // pred_region
          _
        $region36: #{tpu_custom_call.1} parent=11 // pred_fallthru
          _
      $region12: #{tpu_custom_call.1} parent=5 // pred_fallthru
        _
      %p254 = scmp.lt.s32.totalorder %s22, 8
      // Predicated region
      $region37: #{tpu_custom_call.1} parent=5 // pred_check
        %p255 = pneg %p254
      $region38: #{tpu_custom_call.1} parent=5 // pred_check_branch
        %257 = sbr.rel (%p255) target = $region40
      $region39: #{tpu_custom_call.1} parent=5 // pred_region
        // Predicated region
        $region41: #{tpu_custom_call.1} parent=39 // pred_check
          %p258 = pneg %p42
        $region42: #{tpu_custom_call.1} parent=39 // pred_check_branch
          %260 = sbr.rel (%p258) target = $region44
        $region43: #{tpu_custom_call.1} parent=39 // pred_region
          %s261 = sand.u32 %s32, 1
          %s262 = scalar_lea.sflag [#allocation4], %s261
          %s263 = sand.u32 %s32, 1
          %s264 = smul.addr %s263, 16
          %s265 = scalar_lea.vmem [#allocation3], %s264
          %s267 = ssub.s32 256, 256
          %268 = vsyncadd %s262, %s267
          %s269 = smul.addr %s22, 2
          %s270 = smul.addr %s269, 128
          %s271 = scalar_lea.hbm %s0, %s270
          %s272 = sshll.u32 %s265, 4
          %s273 = int_to_ptr.vmem [resolvable:$true] %s272
          %278 = dma.hbm_to_vmem [thread:$0]  %s271, 256, %s273, %s262, 128, 128, 8
        $region44: #{tpu_custom_call.1} parent=39 // pred_fallthru
          _
      $region40: #{tpu_custom_call.1} parent=5 // pred_fallthru
        _
      %p279 = scmp.le.s32.totalorder 1, %s22
      %p280 = scmp.lt.s32.totalorder %s22, 9
      %p281 = pnand %p279, %p280
      %p282 = pneg %p281
      // Predicated region
      $region45: #{tpu_custom_call.1} parent=5 // pred_check
        _
      $region46: #{tpu_custom_call.1} parent=5 // pred_check_branch
        %284 = sbr.rel (%p281) target = $region48
      $region47: #{tpu_custom_call.1} parent=5 // pred_region
        %s285 = ssub.s32 %s22, 1
        %s286 = sand.u32 %s35, 1
        %s287 = scalar_lea.sflag [#allocation4], %s286
        %s288 = sand.u32 %s35, 1
        %s289 = smul.addr %s288, 16
        %s290 = scalar_lea.vmem [#allocation3], %s289
        // Predicated region
        $region49: #{tpu_custom_call.1} parent=47 // pred_check
          %p291 = pneg %p48
        $region50: #{tpu_custom_call.1} parent=47 // pred_check_branch
          %293 = sbr.rel (%p291) target = $region52
        $region51: #{tpu_custom_call.1} parent=47 // pred_region
          %294 = dma.done %s287, 256
        $region52: #{tpu_custom_call.1} parent=47 // pred_fallthru
          _
        %s295 = sand.u32 %s35, 1
        %s296 = scalar_lea.sflag [#allocation4], %s295
        %s297 = sand.u32 %s35, 1
        %s298 = smul.addr %s297, 16
        %s299 = scalar_lea.vmem [#allocation3], %s298
        %p300 = pneg %p48
        %p301 = pneg %p45
        %p302 = pneg %p69
        %p303 = pneg %p66
        %p304 = pneg %p90
        %p305 = pneg %p87
        %p306 = pneg %p111
        %p307 = pneg %p108
        %p308 = pneg %p132
        %p309 = pneg %p129
        %p310 = pneg %p153
        %p311 = pneg %p150
        %p312 = pneg %p174
        %p313 = pneg %p171
        %p314 = pneg %p200
        %p315 = pneg %p197
        %s316 = sand.u32 %s187, 1
        %s317 = scalar_lea.sflag [#allocation5], %s316
        %s318 = sand.u32 %s187, 1
        %s319 = smul.addr %s318, 16
        %s320 = scalar_lea.vmem [#allocation6], %s319
        %p321 = pneg %p221
        %p322 = pneg %p218
        %p323 = scmp.eq.s32.totalorder %s27, 0
        // Predicated region
        $region53: #{tpu_custom_call.1} parent=47 // pred_check
          %p324 = pneg %p323
        $region54: #{tpu_custom_call.1} parent=47 // pred_check_branch
          %326 = sbr.rel (%p324) target = $region56
        $region55: #{tpu_custom_call.1} parent=47 // pred_region
          %v327 = vld [vmem:[%s1] sm:$0xff]
          %v328 = vld [vmem:[%s1 + $0x8] sm:$0xff]
          %v329 = vld [vmem:[%s1 + $0x10] sm:$0xff]
          %v330 = vld [vmem:[%s1 + $0x18] sm:$0xff]
          %331 = vst [vmem:[#allocation2] sm:$0xff] %v327
          %332 = vst [vmem:[#allocation2 + $0x8] sm:$0xff] %v328
          %333 = vst [vmem:[#allocation2 + $0x10] sm:$0xff] %v329
          %334 = vst [vmem:[#allocation2 + $0x18] sm:$0xff] %v330
        $region56: #{tpu_custom_call.1} parent=47 // pred_fallthru
          _
        %v335 = vld [vmem:[%s290] sm:$0xff]
        %v336 = vld [vmem:[%s290 + $0x8] sm:$0xff]
        %v337 = vld [vmem:[#allocation2] sm:$0xff]
        %v338 = vld [vmem:[#allocation2 + $0x8] sm:$0xff]
        %v339 = vld [vmem:[#allocation2 + $0x10] sm:$0xff]
        %v340 = vld [vmem:[#allocation2 + $0x18] sm:$0xff]
        %v341 = vld [vmem:[%s2] sm:$0xff]
        %v342 = vld [vmem:[%s2 + $0x8] sm:$0xff]
        %v343 = vld [vmem:[%s2 + $0x10] sm:$0xff]
        %v344 = vld [vmem:[%s2 + $0x18] sm:$0xff]
        %v345 = vld [vmem:[%s3] sm:$0xff]
        %v346 = vld [vmem:[%s3 + $0x8] sm:$0xff]
        %v347 = vld [vmem:[%s3 + $0x10] sm:$0xff]
        %v348 = vld [vmem:[%s3 + $0x18] sm:$0xff]
        %vm349 = vcmask 261120
        %v351 = vsel %vm349, %v345, 0
        %v354 = vsel %vm349, %v346, 0
        %v357 = vsel %vm349, %v347, 0
        %v360 = vsel %vm349, %v348, 0
        %362 = vmatprep.subr.mxu0 0.0
        %363 = vmatpush1.msra.mxu0 %v337
        %364 = vmatprep.subr.mxu0 0.0
        %365 = vmatpush1.msra.mxu0 %v338
        %366 = vmatprep.subr.mxu0 0.0
        %367 = vmatpush1.msra.mxu0 %v339
        %368 = vmatprep.subr.mxu0 0.0
        %369 = vmatpush1.msra.mxu0 %v340
        %370 = vmatprep.subr.mxu0 0.0
        %371 = vmatpush1.msra.mxu0 0.0
        %372 = vmatprep.subr.mxu0 0.0
        %373 = vmatpush1.msra.mxu0 0.0
        %374 = vmatprep.subr.mxu0 0.0
        %375 = vmatpush1.msra.mxu0 0.0
        %376 = vmatprep.subr.mxu0 0.0
        %377 = vmatpush1.msra.mxu0 0.0
        %378 = vmatprep.subr.mxu0 0.0
        %379 = vmatpush1.msra.mxu0 0.0
        %380 = vmatprep.subr.mxu0 0.0
        %381 = vmatpush1.msra.mxu0 0.0
        %382 = vmatprep.subr.mxu0 0.0
        %383 = vmatpush1.msra.mxu0 0.0
        %384 = vmatprep.subr.mxu0 0.0
        %385 = vmatpush1.msra.mxu0 0.0
        %386 = vmatprep.subr.mxu0 0.0
        %387 = vmatpush1.msra.mxu0 0.0
        %388 = vmatprep.subr.mxu0 0.0
        %389 = vmatpush1.msra.mxu0 0.0
        %390 = vmatprep.subr.mxu0 0.0
        %391 = vmatpush1.msra.mxu0 0.0
        %392 = vmatprep.subr.mxu0 0.0
        %393 = vmatpush1.msra.mxu0 0.0
        %394 = vmatprep.subr.mxu0 0.0
        %395 = vmatpush1.msra.mxu0 0.0
        %396 = vmatprep.subr.mxu0 0.0
        %397 = vmatpush1.msra.mxu0 0.0
        %398 = vmatprep.subr.mxu0 0.0
        %399 = vmatpush1.msra.mxu0 0.0
        %400 = vmatprep.subr.mxu0 0.0
        %401 = vmatpush1.msra.mxu0 0.0
        %402 = vmatprep.subr.mxu0 0.0
        %403 = vmatpush1.msra.mxu0 0.0
        %404 = vmatprep.subr.mxu0 0.0
        %405 = vmatpush1.msra.mxu0 0.0
        %406 = vmatprep.subr.mxu0 0.0
        %407 = vmatpush1.msra.mxu0 0.0
        %408 = vmatprep.subr.mxu0 0.0
        %409 = vmatpush1.msra.mxu0 0.0
        %410 = vmatprep.subr.mxu0 0.0
        %411 = vmatpush1.msra.mxu0 0.0
        %412 = vmatprep.subr.mxu0 0.0
        %413 = vmatpush1.msra.mxu0 0.0
        %414 = vmatprep.subr.mxu0 0.0
        %415 = vmatpush1.msra.mxu0 0.0
        %416 = vmatprep.subr.mxu0 0.0
        %417 = vmatpush1.msra.mxu0 0.0
        %418 = vmatprep.subr.mxu0 0.0
        %419 = vmatpush1.msra.mxu0 0.0
        %420 = vmatprep.subr.mxu0 0.0
        %421 = vmatpush1.msra.mxu0 0.0
        %422 = vmatprep.subr.mxu0 0.0
        %423 = vmatpush1.msra.mxu0 0.0
        %424 = vmatprep.subr.mxu0 0.0
        %425 = vmatpush1.msra.mxu0 0.0
        %426 = vmatprep.mubr.f32.mxu0 0.0
        %427 = vmatmul.mubr.f32.gmra.mrb[0].mxu0 %v351
        %v428 = vpop.f32.mrb[0].mxu0
        %v429 = vadd.f32 0.0, %v428
        %v430 = vpop.f32.mrb[0].mxu0
        %431 = vmatprep.mubr.f32.mxu0 0.0
        %432 = vmatmul.mubr.f32.gmra.mrb[0].mxu0 %v354
        %v433 = vpop.f32.mrb[0].mxu0
        %v434 = vadd.f32 0.0, %v433
        %v435 = vpop.f32.mrb[0].mxu0
        %436 = vmatprep.mubr.f32.mxu0 0.0
        %437 = vmatmul.mubr.f32.gmra.mrb[0].mxu0 %v357
        %v438 = vpop.f32.mrb[0].mxu0
        %v439 = vadd.f32 0.0, %v438
        %v440 = vpop.f32.mrb[0].mxu0
        %441 = vmatprep.mubr.f32.mxu0 0.0
        %442 = vmatmul.mubr.f32.gmra.mrb[0].mxu0 %v360
        %v443 = vpop.f32.mrb[0].mxu0
        %v444 = vadd.f32 0.0, %v443
        %v445 = vpop.f32.mrb[0].mxu0
        %446 = vdwg.mxu0
        %vm447 = vcmask 130048
        %v449 = vsel %vm447, %v341, 0
        %v452 = vsel %vm447, %v342, 0
        %v455 = vsel %vm447, %v343, 0
        %v458 = vsel %vm447, %v344, 0
        %460 = vmatprep.subr.mxu0 0.0
        %461 = vmatpush1.msra.mxu0 %v335
        %462 = vmatprep.subr.mxu0 0.0
        %463 = vmatpush1.msra.mxu0 %v336
        %464 = vmatprep.subr.mxu0 0.0
        %465 = vmatpush1.msra.mxu0 0.0
        %466 = vmatprep.subr.mxu0 0.0
        %467 = vmatpush1.msra.mxu0 0.0
        %468 = vmatprep.subr.mxu0 0.0
        %469 = vmatpush1.msra.mxu0 0.0
        %470 = vmatprep.subr.mxu0 0.0
        %471 = vmatpush1.msra.mxu0 0.0
        %472 = vmatprep.subr.mxu0 0.0
        %473 = vmatpush1.msra.mxu0 0.0
        %474 = vmatprep.subr.mxu0 0.0
        %475 = vmatpush1.msra.mxu0 0.0
        %476 = vmatprep.subr.mxu0 0.0
        %477 = vmatpush1.msra.mxu0 0.0
        %478 = vmatprep.subr.mxu0 0.0
        %479 = vmatpush1.msra.mxu0 0.0
        %480 = vmatprep.subr.mxu0 0.0
        %481 = vmatpush1.msra.mxu0 0.0
        %482 = vmatprep.subr.mxu0 0.0
        %483 = vmatpush1.msra.mxu0 0.0
        %484 = vmatprep.subr.mxu0 0.0
        %485 = vmatpush1.msra.mxu0 0.0
        %486 = vmatprep.subr.mxu0 0.0
        %487 = vmatpush1.msra.mxu0 0.0
        %488 = vmatprep.subr.mxu0 0.0
        %489 = vmatpush1.msra.mxu0 0.0
        %490 = vmatprep.subr.mxu0 0.0
        %491 = vmatpush1.msra.mxu0 0.0
        %492 = vmatprep.subr.mxu0 0.0
        %493 = vmatpush1.msra.mxu0 0.0
        %494 = vmatprep.subr.mxu0 0.0
        %495 = vmatpush1.msra.mxu0 0.0
        %496 = vmatprep.subr.mxu0 0.0
        %497 = vmatpush1.msra.mxu0 0.0
        %498 = vmatprep.subr.mxu0 0.0
        %499 = vmatpush1.msra.mxu0 0.0
        %500 = vmatprep.subr.mxu0 0.0
        %501 = vmatpush1.msra.mxu0 0.0
        %502 = vmatprep.subr.mxu0 0.0
        %503 = vmatpush1.msra.mxu0 0.0
        %504 = vmatprep.subr.mxu0 0.0
        %505 = vmatpush1.msra.mxu0 0.0
        %506 = vmatprep.subr.mxu0 0.0
        %507 = vmatpush1.msra.mxu0 0.0
        %508 = vmatprep.subr.mxu0 0.0
        %509 = vmatpush1.msra.mxu0 0.0
        %510 = vmatprep.subr.mxu0 0.0
        %511 = vmatpush1.msra.mxu0 0.0
        %512 = vmatprep.subr.mxu0 0.0
        %513 = vmatpush1.msra.mxu0 0.0
        %514 = vmatprep.subr.mxu0 0.0
        %515 = vmatpush1.msra.mxu0 0.0
        %516 = vmatprep.subr.mxu0 0.0
        %517 = vmatpush1.msra.mxu0 0.0
        %518 = vmatprep.subr.mxu0 0.0
        %519 = vmatpush1.msra.mxu0 0.0
        %520 = vmatprep.subr.mxu0 0.0
        %521 = vmatpush1.msra.mxu0 0.0
        %522 = vmatprep.subr.mxu0 0.0
        %523 = vmatpush1.msra.mxu0 0.0
        %524 = vmatprep.mubr.f32.mxu0 0.0
        %525 = vmatmul.mubr.f32.gmra.mrb[0].mxu0 %v449
        %v526 = vpop.f32.mrb[0].mxu0
        %v527 = vadd.f32 %v429, %v526
        %v528 = vpop.f32.mrb[0].mxu0
        %529 = vmatprep.mubr.f32.mxu0 0.0
        %530 = vmatmul.mubr.f32.gmra.mrb[0].mxu0 %v452
        %v531 = vpop.f32.mrb[0].mxu0
        %v532 = vadd.f32 %v434, %v531
        %v533 = vpop.f32.mrb[0].mxu0
        %534 = vmatprep.mubr.f32.mxu0 0.0
        %535 = vmatmul.mubr.f32.gmra.mrb[0].mxu0 %v455
        %v536 = vpop.f32.mrb[0].mxu0
        %v537 = vadd.f32 %v439, %v536
        %v538 = vpop.f32.mrb[0].mxu0
        %539 = vmatprep.mubr.f32.mxu0 0.0
        %540 = vmatmul.mubr.f32.gmra.mrb[0].mxu0 %v458
        %v541 = vpop.f32.mrb[0].mxu0
        %v542 = vadd.f32 %v444, %v541
        %v543 = vpop.f32.mrb[0].mxu0
        %544 = vdwg.mxu0
        %v545 = vld [vmem:[%s4] sm:$0xff]
        %v546 = vld [vmem:[%s4 + $0x8] sm:$0xff]
        %v547 = vld [vmem:[%s4 + $0x10] sm:$0xff]
        %v548 = vld [vmem:[%s4 + $0x18] sm:$0xff]
        %550 = vset.pattern.permute.xlu0 0
        %551 = vperm.xlu0 %550, %v545
        %v552 = vpop.permute.xlu0 %551
        %555 = vset.pattern.permute.xlu0 0
        %556 = vperm.xlu0 %555, %v546
        %v557 = vpop.permute.xlu0 %556
        %560 = vset.pattern.permute.xlu0 0
        %561 = vperm.xlu0 %560, %v547
        %v562 = vpop.permute.xlu0 %561
        %565 = vset.pattern.permute.xlu0 0
        %566 = vperm.xlu0 %565, %v548
        %v567 = vpop.permute.xlu0 %566
        %v569 = vadd.f32 %v527, %v552
        %v570 = vadd.f32 %v532, %v557
        %v571 = vadd.f32 %v537, %v562
        %v572 = vadd.f32 %v542, %v567
        %v573 = vtanh.pop %v569
        %v574 = vtanh.pop %v570
        %v575 = vtanh.pop %v571
        %v576 = vtanh.pop %v572
        %v577 = vld [vmem:[%s5] sm:$0xff]
        %v578 = vld [vmem:[%s5 + $0x8] sm:$0xff]
        %v579 = vld [vmem:[%s6] sm:$0xff]
        %v580 = vld [vmem:[%s6 + $0x8] sm:$0xff]
        %582 = vset.pattern.permute.xlu0 0
        %583 = vperm.xlu0 %582, %v579
        %v584 = vpop.permute.xlu0 %583
        %587 = vset.pattern.permute.xlu0 0
        %588 = vperm.xlu0 %587, %v580
        %v589 = vpop.permute.xlu0 %588
        %v592 = vsel %vm349, %v577, 0
        %v595 = vsel %vm349, %v578, 0
        %597 = vmatprep.subr.mxu0 0.0
        %598 = vmatpush1.msra.mxu0 %v573
        %599 = vmatprep.subr.mxu0 0.0
        %600 = vmatpush1.msra.mxu0 %v574
        %601 = vmatprep.subr.mxu0 0.0
        %602 = vmatpush1.msra.mxu0 %v575
        %603 = vmatprep.subr.mxu0 0.0
        %604 = vmatpush1.msra.mxu0 %v576
        %605 = vmatprep.subr.mxu0 0.0
        %606 = vmatpush1.msra.mxu0 0.0
        %607 = vmatprep.subr.mxu0 0.0
        %608 = vmatpush1.msra.mxu0 0.0
        %609 = vmatprep.subr.mxu0 0.0
        %610 = vmatpush1.msra.mxu0 0.0
        %611 = vmatprep.subr.mxu0 0.0
        %612 = vmatpush1.msra.mxu0 0.0
        %613 = vmatprep.subr.mxu0 0.0
        %614 = vmatpush1.msra.mxu0 0.0
        %615 = vmatprep.subr.mxu0 0.0
        %616 = vmatpush1.msra.mxu0 0.0
        %617 = vmatprep.subr.mxu0 0.0
        %618 = vmatpush1.msra.mxu0 0.0
        %619 = vmatprep.subr.mxu0 0.0
        %620 = vmatpush1.msra.mxu0 0.0
        %621 = vmatprep.subr.mxu0 0.0
        %622 = vmatpush1.msra.mxu0 0.0
        %623 = vmatprep.subr.mxu0 0.0
        %624 = vmatpush1.msra.mxu0 0.0
        %625 = vmatprep.subr.mxu0 0.0
        %626 = vmatpush1.msra.mxu0 0.0
        %627 = vmatprep.subr.mxu0 0.0
        %628 = vmatpush1.msra.mxu0 0.0
        %629 = vmatprep.subr.mxu0 0.0
        %630 = vmatpush1.msra.mxu0 0.0
        %631 = vmatprep.subr.mxu0 0.0
        %632 = vmatpush1.msra.mxu0 0.0
        %633 = vmatprep.subr.mxu0 0.0
        %634 = vmatpush1.msra.mxu0 0.0
        %635 = vmatprep.subr.mxu0 0.0
        %636 = vmatpush1.msra.mxu0 0.0
        %637 = vmatprep.subr.mxu0 0.0
        %638 = vmatpush1.msra.mxu0 0.0
        %639 = vmatprep.subr.mxu0 0.0
        %640 = vmatpush1.msra.mxu0 0.0
        %641 = vmatprep.subr.mxu0 0.0
        %642 = vmatpush1.msra.mxu0 0.0
        %643 = vmatprep.subr.mxu0 0.0
        %644 = vmatpush1.msra.mxu0 0.0
        %645 = vmatprep.subr.mxu0 0.0
        %646 = vmatpush1.msra.mxu0 0.0
        %647 = vmatprep.subr.mxu0 0.0
        %648 = vmatpush1.msra.mxu0 0.0
        %649 = vmatprep.subr.mxu0 0.0
        %650 = vmatpush1.msra.mxu0 0.0
        %651 = vmatprep.subr.mxu0 0.0
        %652 = vmatpush1.msra.mxu0 0.0
        %653 = vmatprep.subr.mxu0 0.0
        %654 = vmatpush1.msra.mxu0 0.0
        %655 = vmatprep.subr.mxu0 0.0
        %656 = vmatpush1.msra.mxu0 0.0
        %657 = vmatprep.subr.mxu0 0.0
        %658 = vmatpush1.msra.mxu0 0.0
        %659 = vmatprep.subr.mxu0 0.0
        %660 = vmatpush1.msra.mxu0 0.0
        %661 = vmatprep.mubr.f32.mxu0 0.0
        %662 = vmatmul.mubr.f32.gmra.mrb[0].mxu0 %v592
        %v663 = vpop.f32.mrb[0].mxu0
        %v664 = vadd.f32 %v584, %v663
        %v665 = vpop.f32.mrb[0].mxu0
        %666 = vmatprep.mubr.f32.mxu0 0.0
        %667 = vmatmul.mubr.f32.gmra.mrb[0].mxu0 %v595
        %v668 = vpop.f32.mrb[0].mxu0
        %v669 = vadd.f32 %v589, %v668
        %v670 = vpop.f32.mrb[0].mxu0
        %671 = vdwg.mxu0
        %672 = vst [vmem:[%s320] sm:$0xff] %v664
        %673 = vst [vmem:[%s320 + $0x8] sm:$0xff] %v669
        %674 = vst [vmem:[#allocation2] sm:$0xff] %v573
        %675 = vst [vmem:[#allocation2 + $0x8] sm:$0xff] %v574
        %676 = vst [vmem:[#allocation2 + $0x10] sm:$0xff] %v575
        %677 = vst [vmem:[#allocation2 + $0x18] sm:$0xff] %v576
        %p678 = scmp.eq.s32.totalorder %s27, 7
        // Predicated region
        $region57: #{tpu_custom_call.1} parent=47 // pred_check
          %p679 = pneg %p678
        $region58: #{tpu_custom_call.1} parent=47 // pred_check_branch
          %681 = sbr.rel (%p679) target = $region60
        $region59: #{tpu_custom_call.1} parent=47 // pred_region
          %682 = vst [vmem:[#allocation7] sm:$0xff] %v573
          %683 = vst [vmem:[#allocation7 + $0x8] sm:$0xff] %v574
          %684 = vst [vmem:[#allocation7 + $0x10] sm:$0xff] %v575
          %685 = vst [vmem:[#allocation7 + $0x18] sm:$0xff] %v576
        $region60: #{tpu_custom_call.1} parent=47 // pred_fallthru
          _
        %s686 = sand.u32 %s187, 1
        %s687 = scalar_lea.sflag [#allocation5], %s686
        %s688 = sand.u32 %s187, 1
        %s689 = smul.addr %s688, 16
        %s690 = scalar_lea.vmem [#allocation6], %s689
        // Predicated region
        $region61: #{tpu_custom_call.1} parent=47 // pred_check
          %p691 = pneg %p197
        $region62: #{tpu_custom_call.1} parent=47 // pred_check_branch
          %693 = sbr.rel (%p691) target = $region64
        $region63: #{tpu_custom_call.1} parent=47 // pred_region
          %s695 = ssub.s32 256, 256
          %696 = vsyncadd %s687, %s695
          %s697 = smul.addr %s27, 2
          %s698 = smul.addr %s697, 128
          %s699 = scalar_lea.hbm %s7, %s698
          %s700 = sshll.u32 %s690, 4
          %s701 = int_to_ptr.vmem [resolvable:$true] %s700
          %706 = dma.vmem_to_hbm [thread:$0]  %s701, 256, %s699, %s687, 128, 128, 8
        $region64: #{tpu_custom_call.1} parent=47 // pred_fallthru
          _
        // Predicated region
        $region65: #{tpu_custom_call.1} parent=47 // pred_check
          %p707 = pneg %p218
        $region66: #{tpu_custom_call.1} parent=47 // pred_check_branch
          %709 = sbr.rel (%p707) target = $region68
        $region67: #{tpu_custom_call.1} parent=47 // pred_region
          %s711 = ssub.s32 512, 512
          %712 = vsyncadd [#allocation8], %s711
          %s713 = sshll.u32 [#allocation7], 4
          %s714 = int_to_ptr.vmem [resolvable:$true] %s713
          %719 = dma.vmem_to_hbm [thread:$0]  %s714, 512, %s8, [#allocation8], 128, 128, 8
        $region68: #{tpu_custom_call.1} parent=47 // pred_fallthru
          _
        // Predicated region
        $region69: #{tpu_custom_call.1} parent=47 // pred_check
          %p720 = pneg %p218
        $region70: #{tpu_custom_call.1} parent=47 // pred_check_branch
          %722 = sbr.rel (%p720) target = $region72
        $region71: #{tpu_custom_call.1} parent=47 // pred_region
          %723 = dma.done [#allocation8], 512
        $region72: #{tpu_custom_call.1} parent=47 // pred_fallthru
          _
      $region48: #{tpu_custom_call.1} parent=5 // pred_fallthru
        _
      %p724 = scmp.le.s32.totalorder 2, %s22
      // Predicated region
      $region73: #{tpu_custom_call.1} parent=5 // pred_check
        %p725 = pneg %p724
      $region74: #{tpu_custom_call.1} parent=5 // pred_check_branch
        %727 = sbr.rel (%p725) target = $region76
      $region75: #{tpu_custom_call.1} parent=5 // pred_region
        %s728 = ssub.s32 %s22, 2
        // Predicated region
        $region77: #{tpu_custom_call.1} parent=75 // pred_check
          %p729 = pneg %p203
        $region78: #{tpu_custom_call.1} parent=75 // pred_check_branch
          %731 = sbr.rel (%p729) target = $region80
        $region79: #{tpu_custom_call.1} parent=75 // pred_region
          %s732 = sand.u32 %s188, 1
          %s733 = scalar_lea.sflag [#allocation5], %s732
          %s734 = sand.u32 %s188, 1
          %s735 = smul.addr %s734, 16
          %s736 = scalar_lea.vmem [#allocation6], %s735
          %737 = dma.done %s733, 256
        $region80: #{tpu_custom_call.1} parent=75 // pred_fallthru
          _
      $region76: #{tpu_custom_call.1} parent=5 // pred_fallthru
        _
    $region6: #{tpu_custom_call.1} parent=1 // loop_footer
      %s26 = sadd.s32 1, %s22
    $region7: #{tpu_custom_call.1} parent=1 // loop_footer_branch
      %21 = sbr.rel target = $region3
    $region8: #{tpu_custom_call.1} parent=1 // loop_exit
      _
    %738 = vsyncpa [#allocation4], 1
    %s739 = scalar_lea.sflag [#allocation4], 1
    %740 = vsyncpa %s739, 1
    %741 = vsyncpa [#allocation5], 1
    %s742 = scalar_lea.sflag [#allocation5], 1
    %743 = vsyncpa %s742, 1
    %744 = vsyncpa [#allocation8], 1

</llo_original>
